<compile_context>
chip_gen: v6e
topology: v6e:2x2x1
jax: 0.10.0
libtpu: 0.0.40
codegen_flags: <defaults>
</compile_context>

<pallas_src>
import functools

import jax
import jax.numpy as jnp
from jax import lax
from jax.experimental import pallas as pl
from jax.experimental.pallas import tpu as pltpu

_LANE = 128


def _pnorm_kernel(pred_ref, out_ref, *, p, n_total, tile_n, tiles_per_shard,
                  need_mask):
    c = pl.program_id(0)          # shard (TensorCore) axis   -- "parallel"
    i = pl.program_id(1)          # tile-within-shard axis    -- "arbitrary"

    @pl.when(i == 0)
    def _():
        out_ref[...] = jnp.zeros_like(out_ref)

    x = pred_ref[...].astype(jnp.float32)               # (tile_n, C)

    if need_mask:
        # Unclamped global tile index (the index_map clamps the DMA source,
        # but the mask must use the logical tile position).
        t = c * tiles_per_shard + i
        row_idx = t * tile_n + lax.broadcasted_iota(jnp.int32, (tile_n, 1), 0)
        row_ok = row_idx < n_total
        # Zero garbage rows BEFORE exp so they stay finite.
        x = jnp.where(row_ok, x, 0.0)

    # softmax pieces over the class axis (PyTorch dim=1)
    m = jnp.max(x, axis=1, keepdims=True)                # (tile_n, 1)
    e = jnp.exp(x - m)
    s = jnp.sum(e, axis=1, keepdims=True)                # (tile_n, 1)

    # clamp(softmax, 1e-7, 1)**p ; upper clamp dropped (softmax <= 1).
    # p is a trace-time Python float.
    if p == 1.0:
        powed = jnp.maximum(e * pl.reciprocal(s, approx=True), 1e-7)
    elif p == 2.0:
        sm = jnp.maximum(e * pl.reciprocal(s, approx=True), 1e-7)
        powed = sm * sm
    elif p == 0.5:
        # fused: (e/s)^0.5 = sqrt(e) * rsqrt(s); clamp commutes with the power
        powed = jnp.maximum(jnp.sqrt(e) * lax.rsqrt(s), 1e-7 ** 0.5)
    else:
        # fused generic p: (e/s)^p = exp(p*(x-m)) * s^(-p)  (one per-row pow,
        # no per-element pow / divide)
        powed = jnp.maximum(jnp.exp(p * (x - m)) * (s ** (-p)), 1e-7 ** p)

    if need_mask:
        powed = jnp.where(row_ok, powed, 0.0)

    # Single full reduce per tile; accumulate into the resident per-shard
    # output block (tiny: one vreg row).
    out_ref[...] += jnp.sum(powed)


def pnorm(pred, p=0.5, tile_n=None, num_shards=None,
          vmem_budget_bytes=24 * 1024 * 1024):
    """Pallas implementation of pNorm.forward(pred): mean_n sum_c softmax(pred)^p."""
    N, C = pred.shape
    itemsize = jnp.dtype(pred.dtype).itemsize
    # Sublane packing: 8 rows for 4-byte, 16 for 2-byte, 32 for 1-byte dtypes.
    row_align = max(8, 32 // itemsize)
    # VMEM blocks are padded to 128 lanes regardless of C.
    c_pad = pl.cdiv(C, _LANE) * _LANE
    n_buffers = 2  # default double-buffering of the input BlockSpec

    if tile_n is None:
        max_rows = vmem_budget_bytes // (n_buffers * c_pad * itemsize)
        max_rows = max(row_align, (max_rows // row_align) * row_align)
        n_aligned = pl.cdiv(N, row_align) * row_align
        tile_n = min(n_aligned, max_rows)
    assert tile_n % row_align == 0, "tile_n must respect sublane packing"

    num_tiles = pl.cdiv(N, tile_n)
    if num_shards is None:
        num_shards = 2 if num_tiles >= 2 else 1   # v7x: one shard per TensorCore
    num_shards = max(1, min(num_shards, num_tiles))
    tiles_per_shard = pl.cdiv(num_tiles, num_shards)
    # Mask only when some processed tile covers rows >= N (ragged tail or the
    # clamped duplicate tile of an uneven shard split).
    need_mask = (num_shards * tiles_per_shard * tile_n) != N

    # vmem limit from the true padded footprint (+ headroom), not a hard 32 MiB.
    in_bytes = n_buffers * tile_n * c_pad * itemsize
    out_bytes = n_buffers * 8 * _LANE * 4
    vmem_limit = max(in_bytes + out_bytes + (4 << 20), 16 << 20)

    kernel = functools.partial(
        _pnorm_kernel, p=float(p), n_total=N, tile_n=tile_n,
        tiles_per_shard=tiles_per_shard, need_mask=need_mask)

    def in_map(c_idx, i_idx):
        # Clamp the DMA source tile; out-of-range logical tiles are fully
        # masked inside the kernel.
        t = c_idx * tiles_per_shard + i_idx
        return (jnp.minimum(t, num_tiles - 1), 0)

    partials = pl.pallas_call(
        kernel,
        out_shape=jax.ShapeDtypeStruct((num_shards, 8, _LANE), jnp.float32),
        grid_spec=pltpu.PrefetchScalarGridSpec(
            num_scalar_prefetch=0,
            grid=(num_shards, tiles_per_shard),
            in_specs=[pl.BlockSpec((tile_n, C), in_map)],
            out_specs=pl.BlockSpec((1, 8, _LANE),
                                   lambda c_idx, i_idx: (c_idx, 0, 0)),
        ),
        compiler_params=pltpu.CompilerParams(
            dimension_semantics=("parallel", "arbitrary"),
            vmem_limit_bytes=int(vmem_limit),
        ),
    )(pred)

    # Sum the per-shard partials and take the batch mean.
    return jnp.sum(partials[:, 0, 0]) / jnp.float32(N)


def pnorm_ref(pred, p=0.5):
    """Pure-JAX reference (mirrors the PyTorch forward)."""
    sm = jax.nn.softmax(pred.astype(jnp.float32), axis=1)
    sm = jnp.clip(sm, 1e-7, 1.0)
    return jnp.mean(jnp.sum(sm ** p, axis=1))


if __name__ == "__main__":
    k0, k1, k2 = jax.random.split(jax.random.PRNGKey(0), 3)

    # 1) Primary demo: small single-tile batch, fused sqrt path (p = 0.5).
    pred = jax.random.normal(k0, (32, 16), dtype=jnp.float32)
    out = jax.block_until_ready(pnorm(pred, p=0.5))
    ref = pnorm_ref(pred, p=0.5)
    assert jnp.allclose(out, ref, rtol=1e-3, atol=1e-6), (out, ref)

    # 2) Multi-tile, 2-shard grid with masked ragged/duplicate tiles,
    #    p == 2 fast path (approx reciprocal -> loss-scalar tolerance).
    pred2 = jax.random.normal(k1, (40, 128), dtype=jnp.float32)
    out2 = jax.block_until_ready(pnorm(pred2, p=2.0, tile_n=16))
    ref2 = pnorm_ref(pred2, p=2.0)
    assert jnp.allclose(out2, ref2, rtol=1e-2, atol=1e-6), (out2, ref2)

    # 3) Generic p (fused exp/pow path) on the same ragged multi-tile layout.
    out3 = jax.block_until_ready(pnorm(pred2, p=0.7, tile_n=16))
    ref3 = pnorm_ref(pred2, p=0.7)
    assert jnp.allclose(out3, ref3, rtol=1e-3, atol=1e-6), (out3, ref3)

    # 4) Aligned multi-tile, 2 shards, mask compiled out (fast path).
    pred3 = jax.random.normal(k2, (64, 128), dtype=jnp.float32)
    out4 = jax.block_until_ready(pnorm(pred3, p=0.5, tile_n=16))
    ref4 = pnorm_ref(pred3, p=0.5)
    assert jnp.allclose(out4, ref4, rtol=1e-3, atol=1e-6), (out4, ref4)

    print("KERNEL_OK")
</pallas_src>

<mosaic_0001>
module attributes {stable_mosaic.version = 11 : i64} {
  func.func @_pnorm_kernel(%arg0: i32, %arg1: i32, %arg2: memref<32x16xf32, #tpu.memory_space<vmem>>, %arg3: memref<1x8x128xf32, #tpu.memory_space<vmem>>) attributes {dimension_semantics = [#tpu.dimension_semantics<parallel>, #tpu.dimension_semantics<arbitrary>], iteration_bounds = array<i64: 1, 1>, scalar_prefetch = 0 : i64, scratch_operands = 0 : i64, tpu.core_type = #tpu.core_type<tc>, window_params = [{transform_indices = @transform_0, window_bounds = array<i64: 32, 16>}, {transform_indices = @transform_1, window_bounds = array<i64: 1, 8, 128>}]} {
    %c0_i32 = arith.constant 0 : i32
    %0 = arith.cmpi eq, %arg1, %c0_i32 : i32
    %1 = arith.extui %0 : i1 to i32
    %c0_i32_0 = arith.constant 0 : i32
    %2 = arith.cmpi ne, %1, %c0_i32_0 : i32
    scf.if %2 {
      %cst_11 = arith.constant 0.000000e+00 : f32
      %25 = vector.broadcast %cst_11 : f32 to vector<1x8x128xf32>
      %c0_12 = arith.constant 0 : index
      %c0_13 = arith.constant 0 : index
      %c0_14 = arith.constant 0 : index
      %26 = vector.load %arg3[%c0_12, %c0_13, %c0_14] : memref<1x8x128xf32, #tpu.memory_space<vmem>>, vector<1x8x128xf32>
      tpu.vector_store %arg3[%c0_12, %c0_13, %c0_14], %25 {strides = array<i32>} : memref<1x8x128xf32, #tpu.memory_space<vmem>>, vector<1x8x128xf32>,
    } else {
    }
    %c0 = arith.constant 0 : index
    %c0_1 = arith.constant 0 : index
    %3 = vector.load %arg2[%c0, %c0_1] : memref<32x16xf32, #tpu.memory_space<vmem>>, vector<32x16xf32>
    %cst = arith.constant dense<0xFF800000> : vector<32xf32>
    %4 = vector.multi_reduction <maximumf>, %3, %cst [1] : vector<32x16xf32> to vector<32xf32>
    %5 = vector.shape_cast %4 : vector<32xf32> to vector<32x1xf32>
    %6 = vector.broadcast %5 : vector<32x1xf32> to vector<32x16xf32>
    %7 = arith.subf %3, %6 : vector<32x16xf32>
    %8 = math.exp %7 : vector<32x16xf32>
    %cst_2 = arith.constant dense<0.000000e+00> : vector<32xf32>
    %9 = vector.multi_reduction <add>, %8, %cst_2 [1] : vector<32x16xf32> to vector<32xf32>
    %10 = vector.shape_cast %9 : vector<32xf32> to vector<32x1xf32>
    %11 = math.sqrt %8 : vector<32x16xf32>
    %12 = math.rsqrt %10 : vector<32x1xf32>
    %13 = vector.broadcast %12 : vector<32x1xf32> to vector<32x16xf32>
    %14 = arith.mulf %11, %13 : vector<32x16xf32>
    %cst_3 = arith.constant 3.16227757E-4 : f32
    %15 = vector.broadcast %cst_3 : f32 to vector<32x16xf32>
    %16 = arith.maximumf %14, %15 : vector<32x16xf32>
    %c0_4 = arith.constant 0 : index
    %c0_5 = arith.constant 0 : index
    %c0_6 = arith.constant 0 : index
    %17 = vector.load %arg3[%c0_4, %c0_5, %c0_6] : memref<1x8x128xf32, #tpu.memory_space<vmem>>, vector<1x8x128xf32>
    %18 = vector.shape_cast %16 : vector<32x16xf32> to vector<1x32x16xf32>
    %cst_7 = arith.constant dense<0.000000e+00> : vector<1xf32>
    %19 = vector.multi_reduction <add>, %18, %cst_7 [1, 2] : vector<1x32x16xf32> to vector<1xf32>
    %20 = vector.shape_cast %19 : vector<1xf32> to vector<1x1x1xf32>
    %21 = vector.extract %20[0, 0, 0] : f32 from vector<1x1x1xf32>
    %22 = vector.broadcast %21 : f32 to vector<1x8x128xf32>
    %23 = arith.addf %17, %22 : vector<1x8x128xf32>
    %c0_8 = arith.constant 0 : index
    %c0_9 = arith.constant 0 : index
    %c0_10 = arith.constant 0 : index
    %24 = vector.load %arg3[%c0_8, %c0_9, %c0_10] : memref<1x8x128xf32, #tpu.memory_space<vmem>>, vector<1x8x128xf32>
    tpu.vector_store %arg3[%c0_8, %c0_9, %c0_10], %23 {strides = array<i32>} : memref<1x8x128xf32, #tpu.memory_space<vmem>>, vector<1x8x128xf32>,
    return
  }
  func.func @transform_0(%arg0: i32, %arg1: i32) -> (i32, i32) {
    %c1_i32 = arith.constant 1 : i32
    %0 = arith.muli %arg0, %c1_i32 : i32
    %1 = arith.addi %0, %arg1 : i32
    %c0_i32 = arith.constant 0 : i32
    %2 = arith.minsi %1, %c0_i32 : i32
    %c0_i32_0 = arith.constant 0 : i32
    %c0_i32_1 = arith.constant 0 : i32
    return %2, %c0_i32_0 : i32, i32
  }
  func.func @transform_1(%arg0: i32, %arg1: i32) -> (i32, i32, i32) {
    %c0_i32 = arith.constant 0 : i32
    %c0_i32_0 = arith.constant 0 : i32
    %c0_i32_1 = arith.constant 0 : i32
    return %arg0, %c0_i32, %c0_i32_0 : i32, i32, i32
  }
}

</mosaic_0001>

<llo_original>
// kernel: tpu_custom_call.1
$region0: #{tpu_custom_call.1}
  #allocation0 [shape = 'u32[]', space=smem, size = 0x4, offset = 0x4, fixed_abs, tag = 'smem constant byte address 0x4 - core index']
  #allocation1 [shape = 'u32[144,128]{1,0:T(1,128)}', space=vmem, size = 0x12000, scoped, tag = 'internal scratch']
  %s0 = inlined_call_operand.vmem [shape: f32[32,16], index: 0, kind: input, shape index: {}]
  %s1 = inlined_call_operand.hbm [shape: f32[1,8,128], index: 1, kind: output, shape index: {}]
  %s2 = sld [smem:[#allocation0]]
  $region18: #{tpu_custom_call.1} parent=0
    _
  %s4 = ssub.s32 1, %s2
  %s5 = scalar_select 0, %s4, %s2
  $region1: #{tpu_custom_call.1} parent=0
    #allocation2 [shape = 'u8[4096]{0}', space=vmem, size = 0x1000, scoped, tag = 'output window, operand 0, single buffered']
    #allocation3 [shape = 's32[1]{0}', space=sflag, size = 0x4, scoped, tag = 'scoped memory for tpu_custom_call.1']
    %6 = vsyncpa [#allocation3], 0
    // Predicated region
    $region2: #{tpu_custom_call.1} parent=1 // pred_check
      _
    $region3: #{tpu_custom_call.1} parent=1 // pred_check_branch
      %8 = sbr.rel (0) target = $region5
    $region4: #{tpu_custom_call.1} parent=1 // pred_region
      %s9 = sadd.s32 0, 0
      %p10 = scmp.lt.s32.totalorder %s9, 0
      %s11 = scalar_select %p10, %s9, 0
      %s12 = smul.u32 4, %s11
      %p13 = scmp.lt.s32.totalorder %s12, 3
      %s14 = scalar_select %p13, %s12, 3
      %s15 = smul.addr %s14, 8
      %s16 = scalar_lea.vmem %s0, %s15
      %s17 = sadd.s32 0, 0
      %p18 = scmp.lt.s32.totalorder %s17, 0
      %s19 = scalar_select %p18, %s17, 0
      %s20 = smul.u32 4, %s19
    $region5: #{tpu_custom_call.1} parent=1 // pred_fallthru
      _
    %s21 = sadd.s32 0, 0
    %p22 = scmp.lt.s32.totalorder %s21, 0
    %s23 = scalar_select %p22, %s21, 0
    %s24 = smul.u32 4, %s23
    %p25 = scmp.lt.s32.totalorder %s24, 3
    %s26 = scalar_select %p25, %s24, 3
    %s27 = smul.addr %s26, 8
    %s28 = scalar_lea.vmem %s0, %s27
    %s29 = sadd.s32 0, 0
    %p30 = scmp.lt.s32.totalorder %s29, 0
    %s31 = scalar_select %p30, %s29, 0
    %s32 = smul.u32 4, %s31
    %p33 = scmp.lt.s32.totalorder %s32, 3
    %s34 = scalar_select %p33, %s32, 3
    %s35 = smul.addr %s34, 8
    %s36 = scalar_lea.vmem %s0, %s35
    %s37 = sadd.s32 0, 0
    %p38 = scmp.lt.s32.totalorder %s37, 0
    %s39 = scalar_select %p38, %s37, 0
    %s40 = smul.u32 4, %s39
    %p41 = scmp.eq.s32.totalorder 0, 0
    // Predicated region
    $region6: #{tpu_custom_call.1} parent=1 // pred_check
      %p42 = pneg %p41
    $region7: #{tpu_custom_call.1} parent=1 // pred_check_branch
      %44 = sbr.rel (%p42) target = $region9
    $region8: #{tpu_custom_call.1} parent=1 // pred_region
      %45 = vst [vmem:[#allocation2] sm:$0xff] 0.0
    $region9: #{tpu_custom_call.1} parent=1 // pred_fallthru
      _
    %v46 = vld [vmem:[%s36] sm:$0xff]
    %v47 = vld [vmem:[%s36 + $0x8] sm:$0xff]
    %v48 = vld [vmem:[%s36 + $0x10] sm:$0xff]
    %v49 = vld [vmem:[%s36 + $0x18] sm:$0xff]
    %vm50 = vcmask 130048
    %v51 = vsel %vm50, %v46, -inf
    %52 = vmax.xlane.f32.xlu0 %v51
    %v53 = vpop.xlane.xlu0 %52
    %v54 = vsel %vm50, %v47, -inf
    %55 = vmax.xlane.f32.xlu0 %v54
    %v56 = vpop.xlane.xlu0 %55
    %v57 = vsel %vm50, %v48, -inf
    %58 = vmax.xlane.f32.xlu0 %v57
    %v59 = vpop.xlane.xlu0 %58
    %v60 = vsel %vm50, %v49, -inf
    %61 = vmax.xlane.f32.xlu0 %v60
    %v62 = vpop.xlane.xlu0 %61
    %v63 = vsub.f32 %v46, %v53
    %v64 = vsub.f32 %v47, %v56
    %v65 = vsub.f32 %v48, %v59
    %v66 = vsub.f32 %v49, %v62
    %v67 = vmul.f32 %v63, 1.442695
    %v68 = vpow.pop %v67
    %v69 = vmul.f32 %v64, 1.442695
    %v70 = vpow.pop %v69
    %v71 = vmul.f32 %v65, 1.442695
    %v72 = vpow.pop %v71
    %v73 = vmul.f32 %v66, 1.442695
    %v74 = vpow.pop %v73
    %v75 = vsel %vm50, %v68, 0.0
    %76 = vadd.xlane.f32.xlu0 %v75
    %v77 = vpop.xlane.xlu0 %76
    %v78 = vsel %vm50, %v70, 0.0
    %79 = vadd.xlane.f32.xlu0 %v78
    %v80 = vpop.xlane.xlu0 %79
    %v81 = vsel %vm50, %v72, 0.0
    %82 = vadd.xlane.f32.xlu0 %v81
    %v83 = vpop.xlane.xlu0 %82
    %v84 = vsel %vm50, %v74, 0.0
    %85 = vadd.xlane.f32.xlu0 %v84
    %v86 = vpop.xlane.xlu0 %85
    %v87 = vrsqrt.pop %v68
    %v88 = vmul.f32 %v68, %v87
    %vm89 = vcmp.eq.f32.partialorder %v68, inf
    %v90 = vsel %vm89, %v68, %v88
    %vm91 = vcmp.eq.f32.partialorder %v68, 0.0
    %v92 = vand.u32 %v68, 2147483648
    %v93 = vsel %vm91, %v92, %v90
    %v94 = vrsqrt.pop %v70
    %v95 = vmul.f32 %v70, %v94
    %vm96 = vcmp.eq.f32.partialorder %v70, inf
    %v97 = vsel %vm96, %v70, %v95
    %vm98 = vcmp.eq.f32.partialorder %v70, 0.0
    %v99 = vand.u32 %v70, 2147483648
    %v100 = vsel %vm98, %v99, %v97
    %v101 = vrsqrt.pop %v72
    %v102 = vmul.f32 %v72, %v101
    %vm103 = vcmp.eq.f32.partialorder %v72, inf
    %v104 = vsel %vm103, %v72, %v102
    %vm105 = vcmp.eq.f32.partialorder %v72, 0.0
    %v106 = vand.u32 %v72, 2147483648
    %v107 = vsel %vm105, %v106, %v104
    %v108 = vrsqrt.pop %v74
    %v109 = vmul.f32 %v74, %v108
    %vm110 = vcmp.eq.f32.partialorder %v74, inf
    %v111 = vsel %vm110, %v74, %v109
    %vm112 = vcmp.eq.f32.partialorder %v74, 0.0
    %v113 = vand.u32 %v74, 2147483648
    %v114 = vsel %vm112, %v113, %v111
    %v115 = vrsqrt.pop %v77
    %v116 = vrsqrt.pop %v80
    %v117 = vrsqrt.pop %v83
    %v118 = vrsqrt.pop %v86
    %v119 = vmul.f32 %v93, %v115
    %v120 = vmul.f32 %v100, %v116
    %v121 = vmul.f32 %v107, %v117
    %v122 = vmul.f32 %v114, %v118
    %v123 = vmax.f32 %v119, 0.00031622776
    %v124 = vmax.f32 %v120, 0.00031622776
    %v125 = vmax.f32 %v121, 0.00031622776
    %v126 = vmax.f32 %v122, 0.00031622776
    %v127 = vld [vmem:[#allocation2] sm:$0xff]
    %v128 = vsel %vm50, %v123, 0.0
    %v129 = vsel %vm50, %v124, 0.0
    %v130 = vadd.f32 %v128, %v129
    %v131 = vsel %vm50, %v125, 0.0
    %v132 = vadd.f32 %v130, %v131
    %v133 = vsel %vm50, %v126, 0.0
    %v134 = vadd.f32 %v132, %v133
    %135 = vadd.xlane.f32.xlu0 %v134
    %v136 = vpop.xlane.xlu0 %135
    %v137 = vrot.slane %v136, 4
    %v138 = vadd.f32 %v136, %v137
    %v139 = vrot.slane %v138, 2
    %v140 = vadd.f32 %v138, %v139
    %v141 = vrot.slane %v140, 1
    %v142 = vadd.f32 %v140, %v141
    %s143 = vtos %v142
    %v144 = vstv %s143
    %v145 = vadd.f32 %v127, %v144
    %146 = vst [vmem:[#allocation2] sm:$0xff] %v145
    // Predicated region
    $region10: #{tpu_custom_call.1} parent=1 // pred_check
      _
    $region11: #{tpu_custom_call.1} parent=1 // pred_check_branch
      %148 = sbr.rel (0) target = $region13
    $region12: #{tpu_custom_call.1} parent=1 // pred_region
      %s150 = ssub.s32 128, 128
      %151 = vsyncadd [#allocation3], %s150
      %s153 = sshll.u32 [#allocation2], 4
      %s154 = int_to_ptr.vmem [resolvable:$true] %s153
      %156 = dma.vmem_to_hbm [thread:$0]  %s154, 128, %s1, [#allocation3]
    $region13: #{tpu_custom_call.1} parent=1 // pred_fallthru
      _
    // Predicated region
    $region14: #{tpu_custom_call.1} parent=1 // pred_check
      _
    $region15: #{tpu_custom_call.1} parent=1 // pred_check_branch
      %158 = sbr.rel (0) target = $region17
    $region16: #{tpu_custom_call.1} parent=1 // pred_region
      %159 = dma.done [#allocation3], 128
    $region17: #{tpu_custom_call.1} parent=1 // pred_fallthru
      _
    %160 = vsyncpa [#allocation3], 1

</llo_original>
